<compile_context>
chip_gen: v6e
topology: v6e:2x2x1
jax: 0.10.0
libtpu: 0.0.40
codegen_flags: <defaults>
</compile_context>

<pallas_src>
import jax
import jax.numpy as jnp
import numpy as np
from jax import lax
from jax.experimental import pallas as pl
from jax.experimental.pallas import tpu as pltpu

EPS = 1e-5  # nn.GroupNorm default eps


# --------------------------------------------------------------------------------------
# Shared gate epilogue: sigmoid -> conv2 -> GroupNorm(1, C8) -> Swish -> conv3.
# Operates on (C, 1) / (C8, 1) columns; traced inside the kernels.
# --------------------------------------------------------------------------------------
def _gate_epilogue(v, w2, gam, bet, w3):
    s = jax.nn.sigmoid(v)                                                # (C, 1)
    h = jnp.dot(w2, s, preferred_element_type=jnp.float32)               # (C8, 1)
    mu = jnp.mean(h, keepdims=True)                                      # (1, 1)
    var = jnp.mean(jnp.square(h - mu), keepdims=True)                    # (1, 1)
    hn = (h - mu) * lax.rsqrt(var + EPS)
    hn = hn * gam + bet                                                  # affine
    a = hn * jax.nn.sigmoid(hn)                                          # Swish
    return jnp.dot(w3, a, preferred_element_type=jnp.float32)            # (C, 1)


# --------------------------------------------------------------------------------------
# Fused single-pass kernel: one grid step per batch, whole (C, T) slab resident.
# --------------------------------------------------------------------------------------
def _fused_kernel(x_ref, w1_ref, w2_ref, gam_ref, bet_ref, w3_ref, o_ref):
    xt = x_ref[0]                                                        # (C, T) native dtype
    xf = xt.astype(jnp.float32) if xt.dtype != jnp.float32 else xt
    # u = w1 @ x (1, T); v = x contracted with u over time (C, 1).
    u = jnp.dot(w1_ref[...], xf, preferred_element_type=jnp.float32)
    v = lax.dot_general(xf, u, dimension_numbers=(((1,), (1,)), ((), ())),
                        preferred_element_type=jnp.float32)
    gate = _gate_epilogue(v, w2_ref[...], gam_ref[...], bet_ref[...], w3_ref[...])
    o_ref[0] = (gate * xf).astype(o_ref.dtype)


# --------------------------------------------------------------------------------------
# Fallback two-pass kernels (very long T): pass 1 accumulates v over T tiles and emits
# the per-batch gate; pass 2 is a streaming elementwise multiply.
# --------------------------------------------------------------------------------------
def _gate_kernel(x_ref, w1_ref, w2_ref, gam_ref, bet_ref, w3_ref, gate_ref, v_acc):
    t = pl.program_id(1)

    @pl.when(t == 0)
    def _():
        v_acc[...] = jnp.zeros_like(v_acc)

    xt = x_ref[0]                                                        # (C, tT)
    xf = xt.astype(jnp.float32) if xt.dtype != jnp.float32 else xt
    u = jnp.dot(w1_ref[...], xf, preferred_element_type=jnp.float32)     # (1, tT)
    v_acc[...] += lax.dot_general(
        xf, u, dimension_numbers=(((1,), (1,)), ((), ())),
        preferred_element_type=jnp.float32)                              # (C, 1)

    @pl.when(t == pl.num_programs(1) - 1)
    def _():
        gate = _gate_epilogue(v_acc[...], w2_ref[...], gam_ref[...],
                              bet_ref[...], w3_ref[...])
        gate_ref[0] = gate.astype(gate_ref.dtype)


def _apply_kernel(gate_ref, x_ref, o_ref):
    o_ref[0] = (gate_ref[0] * x_ref[0]).astype(o_ref.dtype)


# --------------------------------------------------------------------------------------
# Sizing helpers.
# --------------------------------------------------------------------------------------
def _vmem_capacity_bytes():
    """Physical VMEM of the current chip; conservative v7x default if unqueryable."""
    try:
        info = pltpu.get_tpu_info()
        cap = getattr(info, "vmem_capacity_bytes", None)
        if cap:
            return int(cap)
    except Exception:
        pass
    return 64 << 20


def _clamp_vmem_limit(need_bytes, cap_bytes):
    """Request actual need (+slack already included) with headroom below physical VMEM."""
    return int(min(max(int(need_bytes), 24 << 20), int(0.85 * cap_bytes)))


def _pick_t_tile(T, C, itemsize, max_block_bytes):
    """Largest multiple-of-128 divisor of T whose (C, tT) block stays under
    max_block_bytes.  T must already be a multiple of 128 (caller pads)."""
    assert T % 128 == 0
    max_t = max(128, (max_block_bytes // (itemsize * C)) // 128 * 128)
    if T <= max_t:
        return T
    for cand in range(max_t, 127, -128):
        if T % cand == 0:
            return cand
    return 128


# --------------------------------------------------------------------------------------
# Public wrapper.
# --------------------------------------------------------------------------------------
def contextnet_gm_forward(x, input_lengths, w1, w2, gamma, beta, w3, *,
                          force_two_pass=False):
    """x: (B, C, T); input_lengths: (B,) int (unused by the reference forward);
    w1: (C,); w2: (C//8, C); gamma/beta: (C//8,); w3: (C, C//8)."""
    del input_lengths  # the PyTorch forward never reads it
    B, C, T = x.shape
    C8 = w2.shape[0]
    itemsize = jnp.dtype(x.dtype).itemsize

    w1_2d = w1.reshape(1, C).astype(jnp.float32)
    w2_2d = w2.astype(jnp.float32)
    gam = gamma.reshape(C8, 1).astype(jnp.float32)
    bet = beta.reshape(C8, 1).astype(jnp.float32)
    w3_2d = w3.astype(jnp.float32)
    weights = (w1_2d, w2_2d, gam, bet, w3_2d)
    wbytes = sum(int(np.prod(w.shape)) * 4 for w in weights)

    cap = _vmem_capacity_bytes()

    # ---------------- Fused single-pass path (preferred) ----------------
    slab_bytes = C * T * itemsize                       # one (C, T) block of x (== out)
    fused_need = 4 * slab_bytes + 2 * wbytes + (8 << 20)  # 2x dbuf of in+out, weights, slack
    if (not force_two_pass) and fused_need <= int(0.72 * cap):
        return pl.pallas_call(
            _fused_kernel,
            out_shape=jax.ShapeDtypeStruct((B, C, T), x.dtype),
            grid_spec=pltpu.PrefetchScalarGridSpec(
                num_scalar_prefetch=0,
                grid=(B,),
                in_specs=[
                    pl.BlockSpec((1, C, T), lambda b: (b, 0, 0)),
                    pl.BlockSpec((1, C), lambda b: (0, 0)),
                    pl.BlockSpec((C8, C), lambda b: (0, 0)),
                    pl.BlockSpec((C8, 1), lambda b: (0, 0)),
                    pl.BlockSpec((C8, 1), lambda b: (0, 0)),
                    pl.BlockSpec((C, C8), lambda b: (0, 0)),
                ],
                out_specs=pl.BlockSpec((1, C, T), lambda b: (b, 0, 0)),
            ),
            compiler_params=pltpu.CompilerParams(
                dimension_semantics=("parallel",),
                vmem_limit_bytes=_clamp_vmem_limit(fused_need, cap),
            ),
        )(x, w1_2d, w2_2d, gam, bet, w3_2d)

    # ---------------- Two-pass fallback (very long T) ----------------
    # Zero-pad T to a multiple of 128: exact (padded columns contribute 0 to v and are
    # sliced off the output) and keeps output stores lane-dense.
    Tp = ((T + 127) // 128) * 128
    xp = x if Tp == T else jnp.pad(x, ((0, 0), (0, 0), (0, Tp - T)))

    max_block_bytes = (8 << 20) if cap >= (96 << 20) else (3 << 20)
    tT = _pick_t_tile(Tp, C, itemsize, max_block_bytes)
    nT = Tp // tT
    block_bytes = C * tT * itemsize

    # Pass 1: per-batch gate (B, C, 1).  T is a reduction axis -> "arbitrary".
    need1 = 2 * block_bytes + 2 * wbytes + 8 * C * 4 + (8 << 20)
    gate = pl.pallas_call(
        _gate_kernel,
        out_shape=jax.ShapeDtypeStruct((B, C, 1), jnp.float32),
        grid_spec=pltpu.PrefetchScalarGridSpec(
            num_scalar_prefetch=0,
            grid=(B, nT),
            in_specs=[
                pl.BlockSpec((1, C, tT), lambda b, t: (b, 0, t)),
                pl.BlockSpec((1, C), lambda b, t: (0, 0)),
                pl.BlockSpec((C8, C), lambda b, t: (0, 0)),
                pl.BlockSpec((C8, 1), lambda b, t: (0, 0)),
                pl.BlockSpec((C8, 1), lambda b, t: (0, 0)),
                pl.BlockSpec((C, C8), lambda b, t: (0, 0)),
            ],
            out_specs=pl.BlockSpec((1, C, 1), lambda b, t: (b, 0, 0)),
            scratch_shapes=[pltpu.VMEM((C, 1), jnp.float32)],
        ),
        compiler_params=pltpu.CompilerParams(
            dimension_semantics=("parallel", "arbitrary"),
            vmem_limit_bytes=_clamp_vmem_limit(need1, cap),
        ),
    )(xp, w1_2d, w2_2d, gam, bet, w3_2d)

    # Pass 2: out = gate * x, fully parallel streaming multiply.
    need2 = 4 * block_bytes + 4 * C * 4 + (8 << 20)
    out = pl.pallas_call(
        _apply_kernel,
        out_shape=jax.ShapeDtypeStruct((B, C, Tp), x.dtype),
        grid_spec=pltpu.PrefetchScalarGridSpec(
            num_scalar_prefetch=0,
            grid=(B, nT),
            in_specs=[
                pl.BlockSpec((1, C, 1), lambda b, t: (b, 0, 0)),
                pl.BlockSpec((1, C, tT), lambda b, t: (b, 0, t)),
            ],
            out_specs=pl.BlockSpec((1, C, tT), lambda b, t: (b, 0, t)),
        ),
        compiler_params=pltpu.CompilerParams(
            dimension_semantics=("parallel", "parallel"),
            vmem_limit_bytes=_clamp_vmem_limit(need2, cap),
        ),
    )(gate, xp)

    return out if Tp == T else out[:, :, :T]


# --------------------------------------------------------------------------------------
# Pure-JAX mirror of the PyTorch forward (explicit bmm path) for verification.
# --------------------------------------------------------------------------------------
def _reference_forward(x, w1, w2, gamma, beta, w3, eps=EPS):
    G = jnp.einsum("bct,bdt->bcd", x, x)                  # torch.bmm(x, x.transpose(1,2))
    v = jnp.einsum("c,bcj->bj", w1, G)                    # Conv1d(C, 1, k=1), no bias
    s = jax.nn.sigmoid(v)                                 # sigmoid().transpose(1,2) -> (B, C)
    h = jnp.einsum("rc,bc->br", w2, s)                    # Conv1d(C, C//8, 1)
    mu = jnp.mean(h, axis=1, keepdims=True)               # GroupNorm(1, C//8)
    var = jnp.mean(jnp.square(h - mu), axis=1, keepdims=True)
    hn = (h - mu) / jnp.sqrt(var + eps)
    hn = hn * gamma[None, :] + beta[None, :]
    a = hn * jax.nn.sigmoid(hn)                           # Swish
    gate = jnp.einsum("cr,br->bc", w3, a)                 # Conv1d(C//8, C, 1)
    return gate[:, :, None] * x                           # repeat(1,1,T) * x


if __name__ == "__main__":
    B, DIM, T = 2, 16, 64
    C8 = DIM // 8

    key = jax.random.PRNGKey(0)
    kx, k1, k2, kg, kb, k3 = jax.random.split(key, 6)

    x = jax.random.normal(kx, (B, DIM, T), dtype=jnp.float32)
    input_lengths = jnp.full((B,), T, dtype=jnp.int32)

    # PyTorch parameter shapes, squeezed of their trailing kernel_size=1 dim:
    #   conv.weight   (1, DIM, 1)      -> w1 (DIM,)
    #   conv2.weight  (DIM//8, DIM, 1) -> w2 (DIM//8, DIM)
    #   groupnorm.weight / bias        -> gamma, beta (DIM//8,)
    #   conv3.weight  (DIM, DIM//8, 1) -> w3 (DIM, DIM//8)
    w1 = 0.05 * jax.random.normal(k1, (DIM,), dtype=jnp.float32)
    w2 = 0.5 * jax.random.normal(k2, (C8, DIM), dtype=jnp.float32)
    gamma = 1.0 + 0.1 * jax.random.normal(kg, (C8,), dtype=jnp.float32)
    beta = 0.1 * jax.random.normal(kb, (C8,), dtype=jnp.float32)
    w3 = 0.5 * jax.random.normal(k3, (DIM, C8), dtype=jnp.float32)

    ref = _reference_forward(x, w1, w2, gamma, beta, w3)

    # Fused single-pass path (slab fits VMEM).
    out_fused = contextnet_gm_forward(x, input_lengths, w1, w2, gamma, beta, w3)
    out_fused = jax.block_until_ready(out_fused)
    np.testing.assert_allclose(np.asarray(out_fused), np.asarray(ref),
                               rtol=1e-4, atol=1e-4)

    # Two-pass fallback (also exercises the T zero-padding: 64 -> 128).
    out_tiled = contextnet_gm_forward(x, input_lengths, w1, w2, gamma, beta, w3,
                                      force_two_pass=True)
    out_tiled = jax.block_until_ready(out_tiled)
    np.testing.assert_allclose(np.asarray(out_tiled), np.asarray(ref),
                               rtol=1e-4, atol=1e-4)

    print("KERNEL_OK")
</pallas_src>

<mosaic_0001>
module attributes {stable_mosaic.version = 11 : i64} {
  func.func @_fused_kernel(%arg0: i32, %arg1: memref<1x16x64xf32, #tpu.memory_space<vmem>>, %arg2: memref<1x16xf32, #tpu.memory_space<vmem>>, %arg3: memref<2x16xf32, #tpu.memory_space<vmem>>, %arg4: memref<2x1xf32, #tpu.memory_space<vmem>>, %arg5: memref<2x1xf32, #tpu.memory_space<vmem>>, %arg6: memref<16x2xf32, #tpu.memory_space<vmem>>, %arg7: memref<1x16x64xf32, #tpu.memory_space<vmem>>) attributes {dimension_semantics = [#tpu.dimension_semantics<parallel>], iteration_bounds = array<i64: 2>, scalar_prefetch = 0 : i64, scratch_operands = 0 : i64, tpu.core_type = #tpu.core_type<tc>, window_params = [{transform_indices = @transform_0, window_bounds = array<i64: 1, 16, 64>}, {pipeline_mode = #tpu.pipeline_mode<synchronous>, transform_indices = @transform_1, window_bounds = array<i64: 1, 16>}, {pipeline_mode = #tpu.pipeline_mode<synchronous>, transform_indices = @transform_2, window_bounds = array<i64: 2, 16>}, {pipeline_mode = #tpu.pipeline_mode<synchronous>, transform_indices = @transform_3, window_bounds = array<i64: 2, 1>}, {pipeline_mode = #tpu.pipeline_mode<synchronous>, transform_indices = @transform_4, window_bounds = array<i64: 2, 1>}, {pipeline_mode = #tpu.pipeline_mode<synchronous>, transform_indices = @transform_5, window_bounds = array<i64: 16, 2>}, {transform_indices = @transform_6, window_bounds = array<i64: 1, 16, 64>}]} {
    %c0 = arith.constant 0 : index
    %c0_0 = arith.constant 0 : index
    %c0_1 = arith.constant 0 : index
    %0 = vector.load %arg1[%c0, %c0_0, %c0_1] : memref<1x16x64xf32, #tpu.memory_space<vmem>>, vector<1x16x64xf32>
    %1 = vector.shape_cast %0 : vector<1x16x64xf32> to vector<16x64xf32>
    %c0_2 = arith.constant 0 : index
    %c0_3 = arith.constant 0 : index
    %2 = vector.load %arg2[%c0_2, %c0_3] : memref<1x16xf32, #tpu.memory_space<vmem>>, vector<1x16xf32>
    %cst = arith.constant dense<0.000000e+00> : vector<1x64xf32>
    %3 = tpu.matmul %2, %1, %cst {dimension_numbers = #tpu.dot_dimension_numbers<[1], [0], [0], [1], [0, 0, 1, 1], [], []>} : vector<1x16xf32>, vector<16x64xf32>, vector<1x64xf32> -> vector<1x64xf32>
    %cst_4 = arith.constant dense<0.000000e+00> : vector<16x1xf32>
    %4 = tpu.matmul %1, %3, %cst_4 {dimension_numbers = #tpu.dot_dimension_numbers<[1], [1], [0], [0], [0, 0, 1, 0], [], []>} : vector<16x64xf32>, vector<1x64xf32>, vector<16x1xf32> -> vector<16x1xf32>
    %c0_5 = arith.constant 0 : index
    %c0_6 = arith.constant 0 : index
    %5 = vector.load %arg3[%c0_5, %c0_6] : memref<2x16xf32, #tpu.memory_space<vmem>>, vector<2x16xf32>
    %c0_7 = arith.constant 0 : index
    %c0_8 = arith.constant 0 : index
    %6 = vector.load %arg4[%c0_7, %c0_8] : memref<2x1xf32, #tpu.memory_space<vmem>>, vector<2x1xf32>
    %c0_9 = arith.constant 0 : index
    %c0_10 = arith.constant 0 : index
    %7 = vector.load %arg5[%c0_9, %c0_10] : memref<2x1xf32, #tpu.memory_space<vmem>>, vector<2x1xf32>
    %c0_11 = arith.constant 0 : index
    %c0_12 = arith.constant 0 : index
    %8 = vector.load %arg6[%c0_11, %c0_12] : memref<16x2xf32, #tpu.memory_space<vmem>>, vector<16x2xf32>
    %9 = arith.negf %4 : vector<16x1xf32>
    %10 = math.exp %9 : vector<16x1xf32>
    %cst_13 = arith.constant 1.000000e+00 : f32
    %11 = vector.broadcast %cst_13 : f32 to vector<16x1xf32>
    %12 = arith.addf %11, %10 : vector<16x1xf32>
    %13 = arith.divf %11, %12 : vector<16x1xf32>
    %cst_14 = arith.constant dense<0.000000e+00> : vector<2x1xf32>
    %14 = tpu.matmul %5, %13, %cst_14 {dimension_numbers = #tpu.dot_dimension_numbers<[1], [0], [0], [1], [0, 0, 1, 1], [], []>} : vector<2x16xf32>, vector<16x1xf32>, vector<2x1xf32> -> vector<2x1xf32>
    %15 = vector.shape_cast %14 : vector<2x1xf32> to vector<1x2x1xf32>
    %cst_15 = arith.constant dense<0.000000e+00> : vector<1xf32>
    %16 = vector.multi_reduction <add>, %15, %cst_15 [1, 2] : vector<1x2x1xf32> to vector<1xf32>
    %17 = vector.shape_cast %16 : vector<1xf32> to vector<1x1x1xf32>
    %18 = vector.extract %17[0, 0, 0] : f32 from vector<1x1x1xf32>
    %19 = vector.broadcast %18 : f32 to vector<1x1xf32>
    %cst_16 = arith.constant 2.000000e+00 : f32
    %20 = vector.broadcast %cst_16 : f32 to vector<1x1xf32>
    %21 = arith.divf %19, %20 : vector<1x1xf32>
    %22 = vector.broadcast %21 : vector<1x1xf32> to vector<2x1xf32>
    %23 = arith.subf %14, %22 : vector<2x1xf32>
    %24 = arith.mulf %23, %23 : vector<2x1xf32>
    %25 = vector.shape_cast %24 : vector<2x1xf32> to vector<1x2x1xf32>
    %cst_17 = arith.constant dense<0.000000e+00> : vector<1xf32>
    %26 = vector.multi_reduction <add>, %25, %cst_17 [1, 2] : vector<1x2x1xf32> to vector<1xf32>
    %27 = vector.shape_cast %26 : vector<1xf32> to vector<1x1x1xf32>
    %28 = vector.extract %27[0, 0, 0] : f32 from vector<1x1x1xf32>
    %29 = vector.broadcast %28 : f32 to vector<1x1xf32>
    %cst_18 = arith.constant 2.000000e+00 : f32
    %30 = vector.broadcast %cst_18 : f32 to vector<1x1xf32>
    %31 = arith.divf %29, %30 : vector<1x1xf32>
    %32 = vector.broadcast %21 : vector<1x1xf32> to vector<2x1xf32>
    %33 = arith.subf %14, %32 : vector<2x1xf32>
    %cst_19 = arith.constant 9.99999974E-6 : f32
    %34 = vector.broadcast %cst_19 : f32 to vector<1x1xf32>
    %35 = arith.addf %31, %34 : vector<1x1xf32>
    %36 = math.rsqrt %35 : vector<1x1xf32>
    %37 = vector.broadcast %36 : vector<1x1xf32> to vector<2x1xf32>
    %38 = arith.mulf %33, %37 : vector<2x1xf32>
    %39 = arith.mulf %38, %6 : vector<2x1xf32>
    %40 = arith.addf %39, %7 : vector<2x1xf32>
    %41 = arith.negf %40 : vector<2x1xf32>
    %42 = math.exp %41 : vector<2x1xf32>
    %cst_20 = arith.constant 1.000000e+00 : f32
    %43 = vector.broadcast %cst_20 : f32 to vector<2x1xf32>
    %44 = arith.addf %43, %42 : vector<2x1xf32>
    %45 = arith.divf %43, %44 : vector<2x1xf32>
    %46 = arith.mulf %40, %45 : vector<2x1xf32>
    %cst_21 = arith.constant dense<0.000000e+00> : vector<16x1xf32>
    %47 = tpu.matmul %8, %46, %cst_21 {dimension_numbers = #tpu.dot_dimension_numbers<[1], [0], [0], [1], [0, 0, 1, 1], [], []>} : vector<16x2xf32>, vector<2x1xf32>, vector<16x1xf32> -> vector<16x1xf32>
    %48 = vector.broadcast %47 : vector<16x1xf32> to vector<16x64xf32>
    %49 = arith.mulf %48, %1 : vector<16x64xf32>
    %c0_22 = arith.constant 0 : index
    %c0_23 = arith.constant 0 : index
    %c0_24 = arith.constant 0 : index
    %50 = vector.load %arg7[%c0_22, %c0_23, %c0_24] : memref<1x16x64xf32, #tpu.memory_space<vmem>>, vector<1x16x64xf32>
    %51 = vector.shape_cast %50 : vector<1x16x64xf32> to vector<16x64xf32>
    %52 = vector.shape_cast %49 : vector<16x64xf32> to vector<1x16x64xf32>
    tpu.vector_store %arg7[%c0_22, %c0_23, %c0_24], %52 {strides = array<i32>} : memref<1x16x64xf32, #tpu.memory_space<vmem>>, vector<1x16x64xf32>,
    return
  }
  func.func @transform_0(%arg0: i32) -> (i32, i32, i32) {
    %c0_i32 = arith.constant 0 : i32
    %c0_i32_0 = arith.constant 0 : i32
    %c0_i32_1 = arith.constant 0 : i32
    return %arg0, %c0_i32, %c0_i32_0 : i32, i32, i32
  }
  func.func @transform_1(%arg0: i32) -> (i32, i32) {
    %c0_i32 = arith.constant 0 : i32
    %c0_i32_0 = arith.constant 0 : i32
    %c0_i32_1 = arith.constant 0 : i32
    return %c0_i32, %c0_i32_0 : i32, i32
  }
  func.func @transform_2(%arg0: i32) -> (i32, i32) {
    %c0_i32 = arith.constant 0 : i32
    %c0_i32_0 = arith.constant 0 : i32
    %c0_i32_1 = arith.constant 0 : i32
    return %c0_i32, %c0_i32_0 : i32, i32
  }
  func.func @transform_3(%arg0: i32) -> (i32, i32) {
    %c0_i32 = arith.constant 0 : i32
    %c0_i32_0 = arith.constant 0 : i32
    %c0_i32_1 = arith.constant 0 : i32
    return %c0_i32, %c0_i32_0 : i32, i32
  }
  func.func @transform_4(%arg0: i32) -> (i32, i32) {
    %c0_i32 = arith.constant 0 : i32
    %c0_i32_0 = arith.constant 0 : i32
    %c0_i32_1 = arith.constant 0 : i32
    return %c0_i32, %c0_i32_0 : i32, i32
  }
  func.func @transform_5(%arg0: i32) -> (i32, i32) {
    %c0_i32 = arith.constant 0 : i32
    %c0_i32_0 = arith.constant 0 : i32
    %c0_i32_1 = arith.constant 0 : i32
    return %c0_i32, %c0_i32_0 : i32, i32
  }
  func.func @transform_6(%arg0: i32) -> (i32, i32, i32) {
    %c0_i32 = arith.constant 0 : i32
    %c0_i32_0 = arith.constant 0 : i32
    %c0_i32_1 = arith.constant 0 : i32
    return %arg0, %c0_i32, %c0_i32_0 : i32, i32, i32
  }
}

</mosaic_0001>

<llo_original>
// kernel: tpu_custom_call.1
$region0: #{tpu_custom_call.1}
  #allocation0 [shape = 'u32[]', space=smem, size = 0x4, offset = 0x4, fixed_abs, tag = 'smem constant byte address 0x4 - core index']
  #allocation1 [shape = 'u32[144,128]{1,0:T(1,128)}', space=vmem, size = 0x12000, scoped, tag = 'internal scratch']
  %s0 = inlined_call_operand.hbm [shape: f32[2,16,64], index: 0, kind: input, shape index: {}]
  %s1 = inlined_call_operand.vmem [shape: f32[1,16], index: 1, kind: input, shape index: {}]
  %s2 = inlined_call_operand.vmem [shape: f32[2,16], index: 2, kind: input, shape index: {}]
  %s3 = inlined_call_operand.vmem [shape: f32[2,1], index: 3, kind: input, shape index: {}]
  %s4 = inlined_call_operand.vmem [shape: f32[2,1], index: 4, kind: input, shape index: {}]
  %s5 = inlined_call_operand.vmem [shape: f32[16,2], index: 5, kind: input, shape index: {}]
  %s6 = inlined_call_operand.hbm [shape: f32[2,16,64], index: 6, kind: output, shape index: {}]
  %s7 = sld [smem:[#allocation0]]
  $region61: #{tpu_custom_call.1} parent=0
    _
  %s9 = ssub.s32 1, %s7
  %s10 = scalar_select 0, %s9, %s7
  $region1: #{tpu_custom_call.1} parent=0
    #allocation2 [shape = 'u8[16384]{0}', space=vmem, size = 0x4000, scoped, tag = 'input window, operand 0']
    #allocation3 [shape = 's32[2]{0}', space=sflag, size = 0x8, scoped, tag = 'scoped memory for tpu_custom_call.1']
    #allocation4 [shape = 's32[2]{0}', space=sflag, size = 0x8, scoped, tag = 'scoped memory for tpu_custom_call.1']
    #allocation5 [shape = 'u8[16384]{0}', space=vmem, size = 0x4000, scoped, tag = 'output window, operand 0']
    %11 = vsyncpa [#allocation3], 0
    %s12 = scalar_lea.sflag [#allocation3], 1
    %13 = vsyncpa %s12, 0
    %14 = vsyncpa [#allocation4], 0
    %s15 = scalar_lea.sflag [#allocation4], 1
    %16 = vsyncpa %s15, 0
    loop: start=0, step=1, limit=4
    $region2: #{tpu_custom_call.1} parent=1 // loop_pre_header
      _
    $region3: #{tpu_custom_call.1} parent=1 // loop_header
      %s18 = sphi 0, %s22
      %p19 = scmp.ge.s32.totalorder %s18, 4
      %s28 = sphi 0, %s30
      %s31 = sphi 0, %s28
      %s32 = sphi 0, %s31
      %s48 = sphi 0, %s32
      %s52 = sphi 0, %s52
      %s54 = sphi 0, %s52
      %s55 = sphi 0, %s54
      %s69 = sphi 0, %s55
      %s73 = sphi 0, %s73
      %s75 = sphi 0, %s73
      %s76 = sphi 0, %s75
      %s90 = sphi 0, %s76
      %s94 = sphi 0, %s94
      %s96 = sphi 0, %s94
      %s97 = sphi 0, %s96
      %s111 = sphi 0, %s97
      %s115 = sphi 0, %s115
      %s117 = sphi 0, %s115
      %s118 = sphi 0, %s117
      %s132 = sphi 0, %s118
      %s136 = sphi 0, %s136
      %s138 = sphi 0, %s136
      %s139 = sphi 0, %s138
      %s153 = sphi 0, %s139
      %s159 = sphi 0, %s161
      %s162 = sphi 0, %s159
      %s163 = sphi 0, %s162
      %s179 = sphi 0, %s163
    $region4: #{tpu_custom_call.1} parent=1 // loop_header_branch
      %21 = sbr.rel (%p19) target = $region8
    $region5: #{tpu_custom_call.1} parent=1 // loop_body
      %s23 = ssub.s32 %s18, 1
      %s24 = ssub.s32 %s18, 2
      %s25 = sadd.s32 %s18, 1
      %s26 = ssub.s32 %s18, %s25
      %p27 = scmp.eq.s32.totalorder %s26, 0
      %s29 = sadd.s32 %s28, 1
      %s30 = scalar_select %p27, %s28, %s29
      %p33 = pneg %p27
      %p34 = scmp.eq.s32.totalorder %s18, 1
      %p35 = por %p33, %p34
      %p36 = scmp.ne.s32.totalorder %s28, %s31
      %p37 = scmp.eq.s32.totalorder %s18, 0
      %p38 = por %p36, %p37
      %p39 = scmp.ne.s32.totalorder %s28, %s31
      %p40 = scmp.eq.s32.totalorder %s23, 1
      %p41 = por %p39, %p40
      %p42 = scmp.ne.s32.totalorder %s31, %s32
      %p43 = scmp.eq.s32.totalorder %s23, 0
      %p44 = por %p42, %p43
      %p45 = scmp.ne.s32.totalorder %s31, %s32
      %p46 = scmp.eq.s32.totalorder %s24, 1
      %p47 = por %p45, %p46
      %p49 = scmp.ne.s32.totalorder %s32, %s48
      %p50 = scmp.eq.s32.totalorder %s24, 0
      %p51 = por %p49, %p50
      %s53 = sadd.s32 %s52, 1
      %p56 = scmp.eq.s32.totalorder %s18, 1
      %p57 = scmp.ne.s32.totalorder %s52, %s54
      %p58 = scmp.eq.s32.totalorder %s18, 0
      %p59 = por %p57, %p58
      %p60 = scmp.ne.s32.totalorder %s52, %s54
      %p61 = scmp.eq.s32.totalorder %s23, 1
      %p62 = por %p60, %p61
      %p63 = scmp.ne.s32.totalorder %s54, %s55
      %p64 = scmp.eq.s32.totalorder %s23, 0
      %p65 = por %p63, %p64
      %p66 = scmp.ne.s32.totalorder %s54, %s55
      %p67 = scmp.eq.s32.totalorder %s24, 1
      %p68 = por %p66, %p67
      %p70 = scmp.ne.s32.totalorder %s55, %s69
      %p71 = scmp.eq.s32.totalorder %s24, 0
      %p72 = por %p70, %p71
      %s74 = sadd.s32 %s73, 1
      %p77 = scmp.eq.s32.totalorder %s18, 1
      %p78 = scmp.ne.s32.totalorder %s73, %s75
      %p79 = scmp.eq.s32.totalorder %s18, 0
      %p80 = por %p78, %p79
      %p81 = scmp.ne.s32.totalorder %s73, %s75
      %p82 = scmp.eq.s32.totalorder %s23, 1
      %p83 = por %p81, %p82
      %p84 = scmp.ne.s32.totalorder %s75, %s76
      %p85 = scmp.eq.s32.totalorder %s23, 0
      %p86 = por %p84, %p85
      %p87 = scmp.ne.s32.totalorder %s75, %s76
      %p88 = scmp.eq.s32.totalorder %s24, 1
      %p89 = por %p87, %p88
      %p91 = scmp.ne.s32.totalorder %s76, %s90
      %p92 = scmp.eq.s32.totalorder %s24, 0
      %p93 = por %p91, %p92
      %s95 = sadd.s32 %s94, 1
      %p98 = scmp.eq.s32.totalorder %s18, 1
      %p99 = scmp.ne.s32.totalorder %s94, %s96
      %p100 = scmp.eq.s32.totalorder %s18, 0
      %p101 = por %p99, %p100
      %p102 = scmp.ne.s32.totalorder %s94, %s96
      %p103 = scmp.eq.s32.totalorder %s23, 1
      %p104 = por %p102, %p103
      %p105 = scmp.ne.s32.totalorder %s96, %s97
      %p106 = scmp.eq.s32.totalorder %s23, 0
      %p107 = por %p105, %p106
      %p108 = scmp.ne.s32.totalorder %s96, %s97
      %p109 = scmp.eq.s32.totalorder %s24, 1
      %p110 = por %p108, %p109
      %p112 = scmp.ne.s32.totalorder %s97, %s111
      %p113 = scmp.eq.s32.totalorder %s24, 0
      %p114 = por %p112, %p113
      %s116 = sadd.s32 %s115, 1
      %p119 = scmp.eq.s32.totalorder %s18, 1
      %p120 = scmp.ne.s32.totalorder %s115, %s117
      %p121 = scmp.eq.s32.totalorder %s18, 0
      %p122 = por %p120, %p121
      %p123 = scmp.ne.s32.totalorder %s115, %s117
      %p124 = scmp.eq.s32.totalorder %s23, 1
      %p125 = por %p123, %p124
      %p126 = scmp.ne.s32.totalorder %s117, %s118
      %p127 = scmp.eq.s32.totalorder %s23, 0
      %p128 = por %p126, %p127
      %p129 = scmp.ne.s32.totalorder %s117, %s118
      %p130 = scmp.eq.s32.totalorder %s24, 1
      %p131 = por %p129, %p130
      %p133 = scmp.ne.s32.totalorder %s118, %s132
      %p134 = scmp.eq.s32.totalorder %s24, 0
      %p135 = por %p133, %p134
      %s137 = sadd.s32 %s136, 1
      %p140 = scmp.eq.s32.totalorder %s18, 1
      %p141 = scmp.ne.s32.totalorder %s136, %s138
      %p142 = scmp.eq.s32.totalorder %s18, 0
      %p143 = por %p141, %p142
      %p144 = scmp.ne.s32.totalorder %s136, %s138
      %p145 = scmp.eq.s32.totalorder %s23, 1
      %p146 = por %p144, %p145
      %p147 = scmp.ne.s32.totalorder %s138, %s139
      %p148 = scmp.eq.s32.totalorder %s23, 0
      %p149 = por %p147, %p148
      %p150 = scmp.ne.s32.totalorder %s138, %s139
      %p151 = scmp.eq.s32.totalorder %s24, 1
      %p152 = por %p150, %p151
      %p154 = scmp.ne.s32.totalorder %s139, %s153
      %p155 = scmp.eq.s32.totalorder %s24, 0
      %p156 = por %p154, %p155
      %s157 = ssub.s32 %s18, %s25
      %p158 = scmp.eq.s32.totalorder %s157, 0
      %s160 = sadd.s32 %s159, 1
      %s161 = scalar_select %p158, %s159, %s160
      %p164 = pneg %p158
      %p165 = scmp.eq.s32.totalorder %s18, 1
      %p166 = por %p164, %p165
      %p167 = scmp.ne.s32.totalorder %s159, %s162
      %p168 = scmp.eq.s32.totalorder %s18, 0
      %p169 = por %p167, %p168
      %p170 = scmp.ne.s32.totalorder %s159, %s162
      %p171 = scmp.eq.s32.totalorder %s23, 1
      %p172 = por %p170, %p171
      %p173 = scmp.ne.s32.totalorder %s162, %s163
      %p174 = scmp.eq.s32.totalorder %s23, 0
      %p175 = por %p173, %p174
      %p176 = scmp.ne.s32.totalorder %s162, %s163
      %p177 = scmp.eq.s32.totalorder %s24, 1
      %p178 = por %p176, %p177
      %p180 = scmp.ne.s32.totalorder %s163, %s179
      %p181 = scmp.eq.s32.totalorder %s24, 0
      %p182 = por %p180, %p181
      %p183 = scmp.le.s32.totalorder 1, %s18
      %p184 = scmp.lt.s32.totalorder %s18, 3
      %p185 = pnand %p183, %p184
      %p186 = pneg %p185
      // Predicated region
      $region9: #{tpu_custom_call.1} parent=5 // pred_check
        _
      $region10: #{tpu_custom_call.1} parent=5 // pred_check_branch
        %188 = sbr.rel (%p185) target = $region12
      $region11: #{tpu_custom_call.1} parent=5 // pred_region
        %s189 = ssub.s32 %s18, 1
        // Predicated region
        $region13: #{tpu_custom_call.1} parent=11 // pred_check
          %p190 = pneg %p65
        $region14: #{tpu_custom_call.1} parent=11 // pred_check_branch
          %192 = sbr.rel (%p190) target = $region16
        $region15: #{tpu_custom_call.1} parent=11 // pred_region
          _
        $region16: #{tpu_custom_call.1} parent=11 // pred_fallthru
          _
        // Predicated region
        $region17: #{tpu_custom_call.1} parent=11 // pred_check
          %p193 = pneg %p86
        $region18: #{tpu_custom_call.1} parent=11 // pred_check_branch
          %195 = sbr.rel (%p193) target = $region20
        $region19: #{tpu_custom_call.1} parent=11 // pred_region
          _
        $region20: #{tpu_custom_call.1} parent=11 // pred_fallthru
          _
        // Predicated region
        $region21: #{tpu_custom_call.1} parent=11 // pred_check
          %p196 = pneg %p107
        $region22: #{tpu_custom_call.1} parent=11 // pred_check_branch
          %198 = sbr.rel (%p196) target = $region24
        $region23: #{tpu_custom_call.1} parent=11 // pred_region
          _
        $region24: #{tpu_custom_call.1} parent=11 // pred_fallthru
          _
        // Predicated region
        $region25: #{tpu_custom_call.1} parent=11 // pred_check
          %p199 = pneg %p128
        $region26: #{tpu_custom_call.1} parent=11 // pred_check_branch
          %201 = sbr.rel (%p199) target = $region28
        $region27: #{tpu_custom_call.1} parent=11 // pred_region
          _
        $region28: #{tpu_custom_call.1} parent=11 // pred_fallthru
          _
        // Predicated region
        $region29: #{tpu_custom_call.1} parent=11 // pred_check
          %p202 = pneg %p149
        $region30: #{tpu_custom_call.1} parent=11 // pred_check_branch
          %204 = sbr.rel (%p202) target = $region32
        $region31: #{tpu_custom_call.1} parent=11 // pred_region
          _
        $region32: #{tpu_custom_call.1} parent=11 // pred_fallthru
          _
      $region12: #{tpu_custom_call.1} parent=5 // pred_fallthru
        _
      %p205 = scmp.lt.s32.totalorder %s18, 2
      // Predicated region
      $region33: #{tpu_custom_call.1} parent=5 // pred_check
        %p206 = pneg %p205
      $region34: #{tpu_custom_call.1} parent=5 // pred_check_branch
        %208 = sbr.rel (%p206) target = $region36
      $region35: #{tpu_custom_call.1} parent=5 // pred_region
        // Predicated region
        $region37: #{tpu_custom_call.1} parent=35 // pred_check
          %p209 = pneg %p38
        $region38: #{tpu_custom_call.1} parent=35 // pred_check_branch
          %211 = sbr.rel (%p209) target = $region40
        $region39: #{tpu_custom_call.1} parent=35 // pred_region
          %s212 = sand.u32 %s28, 1
          %s213 = scalar_lea.sflag [#allocation3], %s212
          %s214 = sand.u32 %s28, 1
          %s215 = smul.addr %s214, 16
          %s216 = scalar_lea.vmem [#allocation2], %s215
          %s218 = ssub.s32 256, 256
          %219 = vsyncadd %s213, %s218
          %s220 = smul.addr %s18, 2
          %s221 = smul.addr %s220, 128
          %s222 = scalar_lea.hbm %s0, %s221
          %s223 = sshll.u32 %s216, 4
          %s224 = int_to_ptr.vmem [resolvable:$true] %s223
          %229 = dma.hbm_to_vmem [thread:$0]  %s222, 256, %s224, %s213, 128, 128, 8
        $region40: #{tpu_custom_call.1} parent=35 // pred_fallthru
          _
      $region36: #{tpu_custom_call.1} parent=5 // pred_fallthru
        _
      %p230 = scmp.le.s32.totalorder 1, %s18
      %p231 = scmp.lt.s32.totalorder %s18, 3
      %p232 = pnand %p230, %p231
      %p233 = pneg %p232
      // Predicated region
      $region41: #{tpu_custom_call.1} parent=5 // pred_check
        _
      $region42: #{tpu_custom_call.1} parent=5 // pred_check_branch
        %235 = sbr.rel (%p232) target = $region44
      $region43: #{tpu_custom_call.1} parent=5 // pred_region
        %s236 = ssub.s32 %s18, 1
        %s237 = sand.u32 %s31, 1
        %s238 = scalar_lea.sflag [#allocation3], %s237
        %s239 = sand.u32 %s31, 1
        %s240 = smul.addr %s239, 16
        %s241 = scalar_lea.vmem [#allocation2], %s240
        // Predicated region
        $region45: #{tpu_custom_call.1} parent=43 // pred_check
          %p242 = pneg %p44
        $region46: #{tpu_custom_call.1} parent=43 // pred_check_branch
          %244 = sbr.rel (%p242) target = $region48
        $region47: #{tpu_custom_call.1} parent=43 // pred_region
          %245 = dma.done %s238, 256
        $region48: #{tpu_custom_call.1} parent=43 // pred_fallthru
          _
        %s246 = sand.u32 %s31, 1
        %s247 = scalar_lea.sflag [#allocation3], %s246
        %s248 = sand.u32 %s31, 1
        %s249 = smul.addr %s248, 16
        %s250 = scalar_lea.vmem [#allocation2], %s249
        %p251 = pneg %p44
        %p252 = pneg %p41
        %p253 = pneg %p65
        %p254 = pneg %p62
        %p255 = pneg %p86
        %p256 = pneg %p83
        %p257 = pneg %p107
        %p258 = pneg %p104
        %p259 = pneg %p128
        %p260 = pneg %p125
        %p261 = pneg %p149
        %p262 = pneg %p146
        %p263 = pneg %p175
        %p264 = pneg %p172
        %s265 = sand.u32 %s162, 1
        %s266 = scalar_lea.sflag [#allocation4], %s265
        %s267 = sand.u32 %s162, 1
        %s268 = smul.addr %s267, 16
        %s269 = scalar_lea.vmem [#allocation5], %s268
        %v270 = vld [vmem:[%s241] sm:$0xff]
        %v271 = vld [vmem:[%s241 + $0x8] sm:$0xff]
        %v272 = vld [vmem:[%s1] sm:$0x1]
        %vm273 = vcmask 130048
        %v275 = vsel %vm273, %v272, 0
        %277 = vmatprep.subr.mxu0 0.0
        %278 = vmatpush1.msra.mxu0 0.0
        %279 = vmatprep.subr.mxu0 0.0
        %280 = vmatpush1.msra.mxu0 0.0
        %281 = vmatprep.subr.mxu0 0.0
        %282 = vmatpush1.msra.mxu0 0.0
        %283 = vmatprep.subr.mxu0 0.0
        %284 = vmatpush1.msra.mxu0 0.0
        %285 = vmatprep.subr.mxu0 0.0
        %286 = vmatpush1.msra.mxu0 0.0
        %287 = vmatprep.subr.mxu0 0.0
        %288 = vmatpush1.msra.mxu0 0.0
        %289 = vmatprep.subr.mxu0 0.0
        %290 = vmatpush1.msra.mxu0 0.0
        %291 = vmatprep.subr.mxu0 0.0
        %292 = vmatpush1.msra.mxu0 0.0
        %293 = vmatprep.subr.mxu0 0.0
        %294 = vmatpush1.msra.mxu0 0.0
        %295 = vmatprep.subr.mxu0 0.0
        %296 = vmatpush1.msra.mxu0 0.0
        %297 = vmatprep.subr.mxu0 0.0
        %298 = vmatpush1.msra.mxu0 0.0
        %299 = vmatprep.subr.mxu0 0.0
        %300 = vmatpush1.msra.mxu0 0.0
        %301 = vmatprep.subr.mxu0 0.0
        %302 = vmatpush1.msra.mxu0 0.0
        %303 = vmatprep.subr.mxu0 0.0
        %304 = vmatpush1.msra.mxu0 0.0
        %305 = vmatprep.subr.mxu0 0.0
        %306 = vmatpush1.msra.mxu0 %v271
        %307 = vmatprep.subr.mxu0 0.0
        %308 = vmatpush1.msra.mxu0 %v270
        %309 = vmatprep.subr.mxu0 0.0
        %310 = vmatpush2.msra.mxu0 0.0
        %311 = vmatprep.subr.mxu0 0.0
        %312 = vmatpush2.msra.mxu0 0.0
        %313 = vmatprep.subr.mxu0 0.0
        %314 = vmatpush2.msra.mxu0 0.0
        %315 = vmatprep.subr.mxu0 0.0
        %316 = vmatpush2.msra.mxu0 0.0
        %317 = vmatprep.subr.mxu0 0.0
        %318 = vmatpush2.msra.mxu0 0.0
        %319 = vmatprep.subr.mxu0 0.0
        %320 = vmatpush2.msra.mxu0 0.0
        %321 = vmatprep.subr.mxu0 0.0
        %322 = vmatpush2.msra.mxu0 0.0
        %323 = vmatprep.subr.mxu0 0.0
        %324 = vmatpush2.msra.mxu0 0.0
        %325 = vmatprep.subr.mxu0 0.0
        %326 = vmatpush2.msra.mxu0 0.0
        %327 = vmatprep.subr.mxu0 0.0
        %328 = vmatpush2.msra.mxu0 0.0
        %329 = vmatprep.subr.mxu0 0.0
        %330 = vmatpush2.msra.mxu0 0.0
        %331 = vmatprep.subr.mxu0 0.0
        %332 = vmatpush2.msra.mxu0 0.0
        %333 = vmatprep.subr.mxu0 0.0
        %334 = vmatpush2.msra.mxu0 0.0
        %335 = vmatprep.subr.mxu0 0.0
        %336 = vmatpush2.msra.mxu0 0.0
        %337 = vmatprep.subr.mxu0 0.0
        %338 = vmatpush2.msra.mxu0 0.0
        %339 = vmatprep.subr.mxu0 0.0
        %340 = vmatpush2.msra.mxu0 0.0
        %341 = vmatprep.mubr.f32.mxu0 0.0
        %342 = vmatmul.mubr.f32.gmra.mxu0 %v275
        %v343 = vpop.f32.mrf.mxu0
        %v344 = vadd.f32 0.0, %v343
        %v345 = vpop.f32.mrf.mxu0
        %346 = vdwg.mxu0
        %v347 = vlaneseq
        %v348 = vshrl.u32 %v347, 7
        %v349 = vsub.s32 0, %v348
        %v350 = vrot.slane %v344, %v349
        %v351 = vmul.f32 %v270, %v350
        %v352 = vmul.f32 %v271, %v350
        %vm353 = vcmask 523264
        %v354 = vsel %vm353, %v351, 0.0
        %355 = vadd.xlane.f32.xlu0 %v354
        %v356 = vpop.xlane.xlu0 %355
        %v357 = vsel %vm353, %v352, 0.0
        %358 = vadd.xlane.f32.xlu0 %v357
        %v359 = vpop.xlane.xlu0 %358
        %v360 = vld [vmem:[%s2] sm:$0x3]
        %v361 = vld [vmem:[%s3] sm:$0x3]
        %v362 = vld [vmem:[%s4] sm:$0x3]
        %v363 = vld [vmem:[%s5] sm:$0xff]
        %v364 = vld [vmem:[%s5 + $0x8] sm:$0xff]
        %v365 = vxor.u32 %v356, 2147483648
        %v366 = vxor.u32 %v359, 2147483648
        %v367 = vmul.f32 %v365, 1.442695
        %v368 = vpow.pop %v367
        %v369 = vmul.f32 %v366, 1.442695
        %v370 = vpow.pop %v369
        %v371 = vadd.f32 %v368, 1.0
        %v372 = vadd.f32 %v370, 1.0
        %v373 = vrcp.pop %v371
        %v374 = vmul.f32 1.0, %v373
        %v375 = vrcp.pop %v372
        %v376 = vmul.f32 1.0, %v375
        %v378 = vsel %vm273, %v360, 0
        %380 = vmatprep.subr.mxu0 0.0
        %381 = vmatpush1.msra.mxu0 0.0
        %382 = vmatprep.subr.mxu0 0.0
        %383 = vmatpush1.msra.mxu0 0.0
        %384 = vmatprep.subr.mxu0 0.0
        %385 = vmatpush1.msra.mxu0 0.0
        %386 = vmatprep.subr.mxu0 0.0
        %387 = vmatpush1.msra.mxu0 0.0
        %388 = vmatprep.subr.mxu0 0.0
        %389 = vmatpush1.msra.mxu0 0.0
        %390 = vmatprep.subr.mxu0 0.0
        %391 = vmatpush1.msra.mxu0 0.0
        %392 = vmatprep.subr.mxu0 0.0
        %393 = vmatpush1.msra.mxu0 0.0
        %394 = vmatprep.subr.mxu0 0.0
        %395 = vmatpush1.msra.mxu0 0.0
        %396 = vmatprep.subr.mxu0 0.0
        %397 = vmatpush1.msra.mxu0 0.0
        %398 = vmatprep.subr.mxu0 0.0
        %399 = vmatpush1.msra.mxu0 0.0
        %400 = vmatprep.subr.mxu0 0.0
        %401 = vmatpush1.msra.mxu0 0.0
        %402 = vmatprep.subr.mxu0 0.0
        %403 = vmatpush1.msra.mxu0 0.0
        %404 = vmatprep.subr.mxu0 0.0
        %405 = vmatpush1.msra.mxu0 0.0
        %406 = vmatprep.subr.mxu0 0.0
        %407 = vmatpush1.msra.mxu0 0.0
        %408 = vmatprep.subr.mxu0 0.0
        %409 = vmatpush1.msra.mxu0 %v376
        %410 = vmatprep.subr.mxu0 0.0
        %411 = vmatpush1.msra.mxu0 %v374
        %412 = vmatprep.subr.mxu0 0.0
        %413 = vmatpush2.msra.mxu0 0.0
        %414 = vmatprep.subr.mxu0 0.0
        %415 = vmatpush2.msra.mxu0 0.0
        %416 = vmatprep.subr.mxu0 0.0
        %417 = vmatpush2.msra.mxu0 0.0
        %418 = vmatprep.subr.mxu0 0.0
        %419 = vmatpush2.msra.mxu0 0.0
        %420 = vmatprep.subr.mxu0 0.0
        %421 = vmatpush2.msra.mxu0 0.0
        %422 = vmatprep.subr.mxu0 0.0
        %423 = vmatpush2.msra.mxu0 0.0
        %424 = vmatprep.subr.mxu0 0.0
        %425 = vmatpush2.msra.mxu0 0.0
        %426 = vmatprep.subr.mxu0 0.0
        %427 = vmatpush2.msra.mxu0 0.0
        %428 = vmatprep.subr.mxu0 0.0
        %429 = vmatpush2.msra.mxu0 0.0
        %430 = vmatprep.subr.mxu0 0.0
        %431 = vmatpush2.msra.mxu0 0.0
        %432 = vmatprep.subr.mxu0 0.0
        %433 = vmatpush2.msra.mxu0 0.0
        %434 = vmatprep.subr.mxu0 0.0
        %435 = vmatpush2.msra.mxu0 0.0
        %436 = vmatprep.subr.mxu0 0.0
        %437 = vmatpush2.msra.mxu0 0.0
        %438 = vmatprep.subr.mxu0 0.0
        %439 = vmatpush2.msra.mxu0 0.0
        %440 = vmatprep.subr.mxu0 0.0
        %441 = vmatpush2.msra.mxu0 0.0
        %442 = vmatprep.subr.mxu0 0.0
        %443 = vmatpush2.msra.mxu0 0.0
        %444 = vmatprep.mubr.f32.mxu0 0.0
        %445 = vmatmul.mubr.f32.gmra.mxu0 %v378
        %v446 = vpop.f32.mrf.mxu0
        %v447 = vadd.f32 0.0, %v446
        %v448 = vpop.f32.mrf.mxu0
        %449 = vdwg.mxu0
        %vm450 = vcmask 1024
        %v451 = vsel %vm450, %v447, 0.0
        %452 = vadd.xlane.f32.xlu0 %v451
        %v453 = vpop.xlane.xlu0 %452
        %v454 = vrot.slane %v453, 4
        %v455 = vadd.f32 %v453, %v454
        %v456 = vrot.slane %v455, 2
        %v457 = vadd.f32 %v455, %v456
        %v458 = vrot.slane %v457, 1
        %v459 = vadd.f32 %v457, %v458
        %s460 = vtos %v459
        %v461 = vstv %s460
        %v462 = vrcp.pop 2.0
        %v463 = vmul.f32 %v461, %v462
        %v464 = vsub.f32 %v447, %v463
        %v465 = vmul.f32 %v464, %v464
        %v466 = vsel %vm450, %v465, 0.0
        %467 = vadd.xlane.f32.xlu0 %v466
        %v468 = vpop.xlane.xlu0 %467
        %v469 = vrot.slane %v468, 4
        %v470 = vadd.f32 %v468, %v469
        %v471 = vrot.slane %v470, 2
        %v472 = vadd.f32 %v470, %v471
        %v473 = vrot.slane %v472, 1
        %v474 = vadd.f32 %v472, %v473
        %s475 = vtos %v474
        %v476 = vstv %s475
        %v477 = vmul.f32 %v476, %v462
        %v478 = vadd.f32 %v477, 1e-05
        %v479 = vrsqrt.pop %v478
        %v480 = vmul.f32 %v464, %v479
        %v481 = vmul.f32 %v480, %v361
        %v482 = vadd.f32 %v481, %v362
        %v483 = vxor.u32 %v482, 2147483648
        %v484 = vmul.f32 %v483, 1.442695
        %v485 = vpow.pop %v484
        %v486 = vadd.f32 %v485, 1.0
        %v487 = vrcp.pop %v486
        %v488 = vmul.f32 1.0, %v487
        %v489 = vmul.f32 %v482, %v488
        %vm490 = vcmask 15360
        %v492 = vsel %vm490, %v363, 0
        %v495 = vsel %vm490, %v364, 0
        %vm497 = vcmask 1041408
        %v499 = vsel %vm497, %v489, 0
        %501 = vmatprep.subr.mxu0 0.0
        %502 = vmatpush1.msra.mxu0 0.0
        %503 = vmatprep.subr.mxu0 0.0
        %504 = vmatpush1.msra.mxu0 0.0
        %505 = vmatprep.subr.mxu0 0.0
        %506 = vmatpush1.msra.mxu0 0.0
        %507 = vmatprep.subr.mxu0 0.0
        %508 = vmatpush1.msra.mxu0 0.0
        %509 = vmatprep.subr.mxu0 0.0
        %510 = vmatpush1.msra.mxu0 0.0
        %511 = vmatprep.subr.mxu0 0.0
        %512 = vmatpush1.msra.mxu0 0.0
        %513 = vmatprep.subr.mxu0 0.0
        %514 = vmatpush1.msra.mxu0 0.0
        %515 = vmatprep.subr.mxu0 0.0
        %516 = vmatpush1.msra.mxu0 0.0
        %517 = vmatprep.subr.mxu0 0.0
        %518 = vmatpush1.msra.mxu0 0.0
        %519 = vmatprep.subr.mxu0 0.0
        %520 = vmatpush1.msra.mxu0 0.0
        %521 = vmatprep.subr.mxu0 0.0
        %522 = vmatpush1.msra.mxu0 0.0
        %523 = vmatprep.subr.mxu0 0.0
        %524 = vmatpush1.msra.mxu0 0.0
        %525 = vmatprep.subr.mxu0 0.0
        %526 = vmatpush1.msra.mxu0 0.0
        %527 = vmatprep.subr.mxu0 0.0
        %528 = vmatpush1.msra.mxu0 0.0
        %529 = vmatprep.subr.mxu0 0.0
        %530 = vmatpush1.msra.mxu0 0.0
        %531 = vmatprep.subr.mxu0 0.0
        %532 = vmatpush1.msra.mxu0 %v499
        %533 = vmatprep.subr.mxu0 0.0
        %534 = vmatpush2.msra.mxu0 0.0
        %535 = vmatprep.subr.mxu0 0.0
        %536 = vmatpush2.msra.mxu0 0.0
        %537 = vmatprep.subr.mxu0 0.0
        %538 = vmatpush2.msra.mxu0 0.0
        %539 = vmatprep.subr.mxu0 0.0
        %540 = vmatpush2.msra.mxu0 0.0
        %541 = vmatprep.subr.mxu0 0.0
        %542 = vmatpush2.msra.mxu0 0.0
        %543 = vmatprep.subr.mxu0 0.0
        %544 = vmatpush2.msra.mxu0 0.0
        %545 = vmatprep.subr.mxu0 0.0
        %546 = vmatpush2.msra.mxu0 0.0
        %547 = vmatprep.subr.mxu0 0.0
        %548 = vmatpush2.msra.mxu0 0.0
        %549 = vmatprep.subr.mxu0 0.0
        %550 = vmatpush2.msra.mxu0 0.0
        %551 = vmatprep.subr.mxu0 0.0
        %552 = vmatpush2.msra.mxu0 0.0
        %553 = vmatprep.subr.mxu0 0.0
        %554 = vmatpush2.msra.mxu0 0.0
        %555 = vmatprep.subr.mxu0 0.0
        %556 = vmatpush2.msra.mxu0 0.0
        %557 = vmatprep.subr.mxu0 0.0
        %558 = vmatpush2.msra.mxu0 0.0
        %559 = vmatprep.subr.mxu0 0.0
        %560 = vmatpush2.msra.mxu0 0.0
        %561 = vmatprep.subr.mxu0 0.0
        %562 = vmatpush2.msra.mxu0 0.0
        %563 = vmatprep.subr.mxu0 0.0
        %564 = vmatpush2.msra.mxu0 0.0
        %565 = vmatprep.mubr.f32.mxu0 0.0
        %566 = vmatmul.mubr.f32.gmra.mxu0 %v492
        %v567 = vpop.f32.mrf.mxu0
        %v568 = vadd.f32 0.0, %v567
        %v569 = vpop.f32.mrf.mxu0
        %570 = vmatprep.mubr.f32.mxu0 0.0
        %571 = vmatmul.mubr.f32.gmra.mxu0 %v495
        %v572 = vpop.f32.mrf.mxu0
        %v573 = vadd.f32 0.0, %v572
        %v574 = vpop.f32.mrf.mxu0
        %575 = vdwg.mxu0
        %577 = vset.pattern.permute.xlu0 0
        %578 = vperm.xlu0 %577, %v568
        %v579 = vpop.permute.xlu0 %578
        %582 = vset.pattern.permute.xlu0 0
        %583 = vperm.xlu0 %582, %v573
        %v584 = vpop.permute.xlu0 %583
        %v586 = vmul.f32 %v579, %v270
        %v587 = vmul.f32 %v584, %v271
        %588 = vst.msk [vmem:[%s269] sm:$0xff] %vm353, %v586
        %589 = vst.msk [vmem:[%s269 + $0x8] sm:$0xff] %vm353, %v587
        %s590 = sand.u32 %s162, 1
        %s591 = scalar_lea.sflag [#allocation4], %s590
        %s592 = sand.u32 %s162, 1
        %s593 = smul.addr %s592, 16
        %s594 = scalar_lea.vmem [#allocation5], %s593
        // Predicated region
        $region49: #{tpu_custom_call.1} parent=43 // pred_check
          %p595 = pneg %p172
        $region50: #{tpu_custom_call.1} parent=43 // pred_check_branch
          %597 = sbr.rel (%p595) target = $region52
        $region51: #{tpu_custom_call.1} parent=43 // pred_region
          %s599 = ssub.s32 256, 256
          %600 = vsyncadd %s591, %s599
          %s601 = smul.addr %s23, 2
          %s602 = smul.addr %s601, 128
          %s603 = scalar_lea.hbm %s6, %s602
          %s604 = sshll.u32 %s594, 4
          %s605 = int_to_ptr.vmem [resolvable:$true] %s604
          %610 = dma.vmem_to_hbm [thread:$0]  %s605, 256, %s603, %s591, 128, 128, 8
        $region52: #{tpu_custom_call.1} parent=43 // pred_fallthru
          _
      $region44: #{tpu_custom_call.1} parent=5 // pred_fallthru
        _
      %p611 = scmp.le.s32.totalorder 2, %s18
      // Predicated region
      $region53: #{tpu_custom_call.1} parent=5 // pred_check
        %p612 = pneg %p611
      $region54: #{tpu_custom_call.1} parent=5 // pred_check_branch
        %614 = sbr.rel (%p612) target = $region56
      $region55: #{tpu_custom_call.1} parent=5 // pred_region
        %s615 = ssub.s32 %s18, 2
        // Predicated region
        $region57: #{tpu_custom_call.1} parent=55 // pred_check
          %p616 = pneg %p178
        $region58: #{tpu_custom_call.1} parent=55 // pred_check_branch
          %618 = sbr.rel (%p616) target = $region60
        $region59: #{tpu_custom_call.1} parent=55 // pred_region
          %s619 = sand.u32 %s163, 1
          %s620 = scalar_lea.sflag [#allocation4], %s619
          %s621 = sand.u32 %s163, 1
          %s622 = smul.addr %s621, 16
          %s623 = scalar_lea.vmem [#allocation5], %s622
          %624 = dma.done %s620, 256
        $region60: #{tpu_custom_call.1} parent=55 // pred_fallthru
          _
      $region56: #{tpu_custom_call.1} parent=5 // pred_fallthru
        _
    $region6: #{tpu_custom_call.1} parent=1 // loop_footer
      %s22 = sadd.s32 1, %s18
    $region7: #{tpu_custom_call.1} parent=1 // loop_footer_branch
      %17 = sbr.rel target = $region3
    $region8: #{tpu_custom_call.1} parent=1 // loop_exit
      _
    %625 = vsyncpa [#allocation3], 1
    %s626 = scalar_lea.sflag [#allocation3], 1
    %627 = vsyncpa %s626, 1
    %628 = vsyncpa [#allocation4], 1
    %s629 = scalar_lea.sflag [#allocation4], 1
    %630 = vsyncpa %s629, 1

</llo_original>
